<compile_context>
chip_gen: v6e
topology: v6e:2x2x1
jax: 0.10.0
libtpu: 0.0.40
codegen_flags: <defaults>
</compile_context>

<pallas_src>
import functools

import jax
import jax.numpy as jnp
from jax import lax
from jax.experimental import pallas as pl
from jax.experimental.pallas import tpu as pltpu


def _round_up(x, m):
    return (x + m - 1) // m * m


def _patch_embed_kernel(x_ref, w_ref, b_ref, g_ref, beta_ref, o_ref, *, eps):
    # x_ref: (TM, K) bf16, w_ref: (K, Cout) bf16, b/g/beta: (1, Cout) f32,
    # o_ref: (TM, Cout) activation dtype (bf16 by default).
    y = jnp.dot(x_ref[...], w_ref[...], preferred_element_type=jnp.float32)
    y = y + b_ref[...]
    # LayerNorm over the channel (lane) axis, in f32.  (Two-pass centered variance kept
    # for numerical parity with nn.LayerNorm; the kernel is HBM-bound, not VPU-bound.)
    mean = jnp.mean(y, axis=-1, keepdims=True)
    centered = y - mean
    var = jnp.mean(centered * centered, axis=-1, keepdims=True)
    inv = lax.rsqrt(var + eps)                      # EUP; effectively free under MXU/DMA
    y = centered * inv * g_ref[...] + beta_ref[...]
    o_ref[...] = y.astype(o_ref.dtype)


def patch_embed_forward(x, conv_w, conv_b, gamma, beta, *, patch_size=(4, 4),
                        eps=1e-5, tile_m=1024, compute_dtype=jnp.bfloat16,
                        out_dtype=None):
    """x: (B, H, W, Cin) NHWC. conv_w: (Cout, Cin, ph, pw) (PyTorch Conv2d layout).
    Returns (B, ceil(H/ph), ceil(W/pw), Cout) in `out_dtype` (default: compute_dtype)."""
    B, H, W, Cin = x.shape
    ph, pw = patch_size
    Cout = conv_w.shape[0]
    if out_dtype is None:
        out_dtype = compute_dtype

    # F.pad(input, (0,0, 0,pad_r, 0,pad_b)) on NHWC == zero-pad bottom/right of H/W.
    # Cast to the compute dtype FIRST so the pad/transpose patchify copy moves bf16.
    pad_b = (-H) % ph
    pad_r = (-W) % pw
    xp = jnp.pad(x.astype(compute_dtype), ((0, 0), (0, pad_b), (0, pad_r), (0, 0)))
    Hp, Wp = H + pad_b, W + pad_r
    nH, nW = Hp // ph, Wp // pw

    # Non-overlapping Conv2d(kernel=stride=patch) == patchify + matmul.
    # Patch rows are flattened in (kh, kw, cin) order; reshape the conv weight to match.
    rows = (xp.reshape(B, nH, ph, nW, pw, Cin)
              .transpose(0, 1, 3, 2, 4, 5)
              .reshape(B * nH * nW, ph * pw * Cin))
    w_mat = conv_w.transpose(2, 3, 1, 0).reshape(ph * pw * Cin, Cout).astype(compute_dtype)

    M, K = rows.shape
    # bf16 packs 16 rows per sublane tile; keep tm a multiple of that.  Clamp tm so the
    # grid has >= 2 row tiles whenever M allows it (v7x: shard across both TensorCores).
    sublane = 16 if compute_dtype == jnp.bfloat16 else 8
    tm = min(tile_m, _round_up(pl.cdiv(M, 2), sublane))
    tm = max(tm, sublane)
    grid_m = pl.cdiv(M, tm)   # ragged last block: OOB reads are unspecified but their
                              # per-row LN outputs are dropped (writes masked), so no
                              # explicit M-padding / trailing slice copy is needed.

    b2 = conv_b.reshape(1, Cout).astype(jnp.float32)
    g2 = gamma.reshape(1, Cout).astype(jnp.float32)
    beta2 = beta.reshape(1, Cout).astype(jnp.float32)

    # NOTE: weight/bias index_maps are constant, so Pallas does not re-DMA them between
    # grid steps; only the x row-tile and output tile stream through the pipeline.
    out = pl.pallas_call(
        functools.partial(_patch_embed_kernel, eps=eps),
        out_shape=jax.ShapeDtypeStruct((M, Cout), out_dtype),
        grid_spec=pltpu.PrefetchScalarGridSpec(
            num_scalar_prefetch=0,
            grid=(grid_m,),
            in_specs=[
                pl.BlockSpec((tm, K), lambda i: (i, 0)),       # x row-tile (pipelined)
                pl.BlockSpec((K, Cout), lambda i: (0, 0)),     # projection weight
                pl.BlockSpec((1, Cout), lambda i: (0, 0)),     # projection bias
                pl.BlockSpec((1, Cout), lambda i: (0, 0)),     # LayerNorm gamma
                pl.BlockSpec((1, Cout), lambda i: (0, 0)),     # LayerNorm beta
            ],
            out_specs=pl.BlockSpec((tm, Cout), lambda i: (i, 0)),
        ),
        compiler_params=pltpu.CompilerParams(
            dimension_semantics=("parallel",),    # v7x: shard row-tiles across both TCs
        ),
    )(rows, w_mat, b2, g2, beta2)

    return out.reshape(B, nH, nW, Cout)


# TODO(synk): the use_conv_embed=True branch (overlapping 7x7/s4 stem or 3x3/s2 conv)
# is not implemented; only the default non-overlapping patchify path is translated.


def _reference(x, conv_w, conv_b, gamma, beta, *, patch_size, eps=1e-5,
               compute_dtype=jnp.bfloat16):
    """Plain-JAX reference mirroring the PyTorch forward (pad -> conv -> layernorm),
    with the same bf16 input rounding as the kernel so only accumulation order differs."""
    B, H, W, Cin = x.shape
    ph, pw = patch_size
    pad_b = (-H) % ph
    pad_r = (-W) % pw
    xp = jnp.pad(x, ((0, 0), (0, pad_b), (0, pad_r), (0, 0)))
    lhs = xp.astype(compute_dtype).astype(jnp.float32)
    rhs = conv_w.astype(compute_dtype).astype(jnp.float32)
    dn = lax.conv_dimension_numbers(lhs.shape, rhs.shape, ("NHWC", "OIHW", "NHWC"))
    y = lax.conv_general_dilated(lhs, rhs, window_strides=(ph, pw), padding="VALID",
                                 dimension_numbers=dn)
    y = y + conv_b.reshape(1, 1, 1, -1)
    mean = y.mean(-1, keepdims=True)
    var = ((y - mean) ** 2).mean(-1, keepdims=True)
    return (y - mean) / jnp.sqrt(var + eps) * gamma + beta


if __name__ == "__main__":
    key = jax.random.PRNGKey(0)
    kx, kw, kb, kg, kbe = jax.random.split(key, 5)

    B, H, W = 2, 18, 18            # non-multiple spatial size exercises the pad path
    in_channels, hidden_channels = 3, 128
    patch_size = (4, 4)

    x = jax.random.normal(kx, (B, H, W, in_channels), dtype=jnp.float32)
    conv_w = (jax.random.normal(kw, (hidden_channels, in_channels, *patch_size))
              * 0.02).astype(jnp.float32)
    conv_b = (jax.random.normal(kb, (hidden_channels,)) * 0.02).astype(jnp.float32)
    gamma = (1.0 + 0.05 * jax.random.normal(kg, (hidden_channels,))).astype(jnp.float32)
    beta = (0.05 * jax.random.normal(kbe, (hidden_channels,))).astype(jnp.float32)

    out = patch_embed_forward(x, conv_w, conv_b, gamma, beta, patch_size=patch_size)
    out = jax.block_until_ready(out)

    ref = _reference(x, conv_w, conv_b, gamma, beta, patch_size=patch_size)
    assert out.shape == (B, 5, 5, hidden_channels), out.shape
    assert out.dtype == jnp.bfloat16, out.dtype
    # bf16 output rounding (~0.4% rel on LN-scale values) + bf16-matmul accumulation
    # order differences => looser tolerance than the old f32-output check.
    err = jnp.abs(out.astype(jnp.float32) - ref).max()
    assert jnp.allclose(out.astype(jnp.float32), ref, atol=3e-2, rtol=3e-2), float(err)

    print("KERNEL_OK")
</pallas_src>

<mosaic_0001>
module attributes {stable_mosaic.version = 11 : i64} {
  func.func @_patch_embed_kernel(%arg0: i32, %arg1: memref<32x48xbf16, #tpu.memory_space<vmem>>, %arg2: memref<48x128xbf16, #tpu.memory_space<vmem>>, %arg3: memref<1x128xf32, #tpu.memory_space<vmem>>, %arg4: memref<1x128xf32, #tpu.memory_space<vmem>>, %arg5: memref<1x128xf32, #tpu.memory_space<vmem>>, %arg6: memref<32x128xbf16, #tpu.memory_space<vmem>>) attributes {dimension_semantics = [#tpu.dimension_semantics<parallel>], iteration_bounds = array<i64: 2>, scalar_prefetch = 0 : i64, scratch_operands = 0 : i64, tpu.core_type = #tpu.core_type<tc>, window_params = [{transform_indices = @transform_0, window_bounds = array<i64: 32, 48>}, {pipeline_mode = #tpu.pipeline_mode<synchronous>, transform_indices = @transform_1, window_bounds = array<i64: 48, 128>}, {pipeline_mode = #tpu.pipeline_mode<synchronous>, transform_indices = @transform_2, window_bounds = array<i64: 1, 128>}, {pipeline_mode = #tpu.pipeline_mode<synchronous>, transform_indices = @transform_3, window_bounds = array<i64: 1, 128>}, {pipeline_mode = #tpu.pipeline_mode<synchronous>, transform_indices = @transform_4, window_bounds = array<i64: 1, 128>}, {transform_indices = @transform_5, window_bounds = array<i64: 32, 128>}]} {
    %c0 = arith.constant 0 : index
    %c0_0 = arith.constant 0 : index
    %0 = vector.load %arg1[%c0, %c0_0] : memref<32x48xbf16, #tpu.memory_space<vmem>>, vector<32x48xbf16>
    %c0_1 = arith.constant 0 : index
    %c0_2 = arith.constant 0 : index
    %1 = vector.load %arg2[%c0_1, %c0_2] : memref<48x128xbf16, #tpu.memory_space<vmem>>, vector<48x128xbf16>
    %cst = arith.constant dense<0.000000e+00> : vector<32x128xf32>
    %2 = tpu.matmul %0, %1, %cst {dimension_numbers = #tpu.dot_dimension_numbers<[1], [0], [0], [1], [0, 0, 1, 1], [], []>} : vector<32x48xbf16>, vector<48x128xbf16>, vector<32x128xf32> -> vector<32x128xf32>
    %c0_3 = arith.constant 0 : index
    %c0_4 = arith.constant 0 : index
    %3 = vector.load %arg3[%c0_3, %c0_4] : memref<1x128xf32, #tpu.memory_space<vmem>>, vector<1x128xf32>
    %4 = vector.broadcast %3 : vector<1x128xf32> to vector<32x128xf32>
    %5 = arith.addf %2, %4 : vector<32x128xf32>
    %cst_5 = arith.constant dense<0.000000e+00> : vector<32xf32>
    %6 = vector.multi_reduction <add>, %5, %cst_5 [1] : vector<32x128xf32> to vector<32xf32>
    %7 = vector.shape_cast %6 : vector<32xf32> to vector<32x1xf32>
    %cst_6 = arith.constant 1.280000e+02 : f32
    %8 = vector.broadcast %cst_6 : f32 to vector<32x1xf32>
    %9 = arith.divf %7, %8 : vector<32x1xf32>
    %10 = vector.broadcast %9 : vector<32x1xf32> to vector<32x128xf32>
    %11 = arith.subf %5, %10 : vector<32x128xf32>
    %12 = arith.mulf %11, %11 : vector<32x128xf32>
    %cst_7 = arith.constant dense<0.000000e+00> : vector<32xf32>
    %13 = vector.multi_reduction <add>, %12, %cst_7 [1] : vector<32x128xf32> to vector<32xf32>
    %14 = vector.shape_cast %13 : vector<32xf32> to vector<32x1xf32>
    %cst_8 = arith.constant 1.280000e+02 : f32
    %15 = vector.broadcast %cst_8 : f32 to vector<32x1xf32>
    %16 = arith.divf %14, %15 : vector<32x1xf32>
    %cst_9 = arith.constant 9.99999974E-6 : f32
    %17 = vector.broadcast %cst_9 : f32 to vector<32x1xf32>
    %18 = arith.addf %16, %17 : vector<32x1xf32>
    %19 = math.rsqrt %18 : vector<32x1xf32>
    %20 = vector.broadcast %19 : vector<32x1xf32> to vector<32x128xf32>
    %21 = arith.mulf %11, %20 : vector<32x128xf32>
    %c0_10 = arith.constant 0 : index
    %c0_11 = arith.constant 0 : index
    %22 = vector.load %arg4[%c0_10, %c0_11] : memref<1x128xf32, #tpu.memory_space<vmem>>, vector<1x128xf32>
    %23 = vector.broadcast %22 : vector<1x128xf32> to vector<32x128xf32>
    %24 = arith.mulf %21, %23 : vector<32x128xf32>
    %c0_12 = arith.constant 0 : index
    %c0_13 = arith.constant 0 : index
    %25 = vector.load %arg5[%c0_12, %c0_13] : memref<1x128xf32, #tpu.memory_space<vmem>>, vector<1x128xf32>
    %26 = vector.broadcast %25 : vector<1x128xf32> to vector<32x128xf32>
    %27 = arith.addf %24, %26 : vector<32x128xf32>
    %28 = arith.truncf %27 : vector<32x128xf32> to vector<32x128xbf16>
    %c0_14 = arith.constant 0 : index
    %c0_15 = arith.constant 0 : index
    %29 = vector.load %arg6[%c0_14, %c0_15] : memref<32x128xbf16, #tpu.memory_space<vmem>>, vector<32x128xbf16>
    tpu.vector_store %arg6[%c0_14, %c0_15], %28 {strides = array<i32>} : memref<32x128xbf16, #tpu.memory_space<vmem>>, vector<32x128xbf16>,
    return
  }
  func.func @transform_0(%arg0: i32) -> (i32, i32) {
    %c0_i32 = arith.constant 0 : i32
    %c0_i32_0 = arith.constant 0 : i32
    return %arg0, %c0_i32 : i32, i32
  }
  func.func @transform_1(%arg0: i32) -> (i32, i32) {
    %c0_i32 = arith.constant 0 : i32
    %c0_i32_0 = arith.constant 0 : i32
    %c0_i32_1 = arith.constant 0 : i32
    return %c0_i32, %c0_i32_0 : i32, i32
  }
  func.func @transform_2(%arg0: i32) -> (i32, i32) {
    %c0_i32 = arith.constant 0 : i32
    %c0_i32_0 = arith.constant 0 : i32
    %c0_i32_1 = arith.constant 0 : i32
    return %c0_i32, %c0_i32_0 : i32, i32
  }
  func.func @transform_3(%arg0: i32) -> (i32, i32) {
    %c0_i32 = arith.constant 0 : i32
    %c0_i32_0 = arith.constant 0 : i32
    %c0_i32_1 = arith.constant 0 : i32
    return %c0_i32, %c0_i32_0 : i32, i32
  }
  func.func @transform_4(%arg0: i32) -> (i32, i32) {
    %c0_i32 = arith.constant 0 : i32
    %c0_i32_0 = arith.constant 0 : i32
    %c0_i32_1 = arith.constant 0 : i32
    return %c0_i32, %c0_i32_0 : i32, i32
  }
  func.func @transform_5(%arg0: i32) -> (i32, i32) {
    %c0_i32 = arith.constant 0 : i32
    %c0_i32_0 = arith.constant 0 : i32
    return %arg0, %c0_i32 : i32, i32
  }
}

</mosaic_0001>

<llo_original>
// kernel: tpu_custom_call.1
$region0: #{tpu_custom_call.1}
  #allocation0 [shape = 'u32[]', space=smem, size = 0x4, offset = 0x4, fixed_abs, tag = 'smem constant byte address 0x4 - core index']
  #allocation1 [shape = 'u32[144,128]{1,0:T(1,128)}', space=vmem, size = 0x12000, scoped, tag = 'internal scratch']
  %s0 = inlined_call_operand.vmem [shape: bf16[50,48], index: 0, kind: input, shape index: {}]
  %s1 = inlined_call_operand.vmem [shape: bf16[48,128], index: 1, kind: input, shape index: {}]
  %s2 = inlined_call_operand.vmem [shape: f32[1,128], index: 2, kind: input, shape index: {}]
  %s3 = inlined_call_operand.vmem [shape: f32[1,128], index: 3, kind: input, shape index: {}]
  %s4 = inlined_call_operand.vmem [shape: f32[1,128], index: 4, kind: input, shape index: {}]
  %s5 = inlined_call_operand.hbm [shape: bf16[50,128], index: 5, kind: output, shape index: {}]
  %s6 = sld [smem:[#allocation0]]
  $region53: #{tpu_custom_call.1} parent=0
    _
  %s8 = ssub.s32 1, %s6
  %s9 = scalar_select 0, %s8, %s6
  $region1: #{tpu_custom_call.1} parent=0
    #allocation2 [shape = 'u8[16384]{0}', space=vmem, size = 0x4000, scoped, tag = 'output window, operand 0']
    #allocation3 [shape = 's32[2]{0}', space=sflag, size = 0x8, scoped, tag = 'scoped memory for tpu_custom_call.1']
    %10 = vsyncpa [#allocation3], 0
    %s11 = scalar_lea.sflag [#allocation3], 1
    %12 = vsyncpa %s11, 0
    loop: start=0, step=1, limit=4
    $region2: #{tpu_custom_call.1} parent=1 // loop_pre_header
      _
    $region3: #{tpu_custom_call.1} parent=1 // loop_header
      %s14 = sphi 0, %s18
      %p15 = scmp.ge.s32.totalorder %s14, 4
      %s24 = sphi 0, %s26
      %s27 = sphi 0, %s24
      %s28 = sphi 0, %s27
      %s44 = sphi 0, %s28
      %s48 = sphi 0, %s48
      %s50 = sphi 0, %s48
      %s51 = sphi 0, %s50
      %s65 = sphi 0, %s51
      %s69 = sphi 0, %s69
      %s71 = sphi 0, %s69
      %s72 = sphi 0, %s71
      %s86 = sphi 0, %s72
      %s90 = sphi 0, %s90
      %s92 = sphi 0, %s90
      %s93 = sphi 0, %s92
      %s107 = sphi 0, %s93
      %s111 = sphi 0, %s111
      %s113 = sphi 0, %s111
      %s114 = sphi 0, %s113
      %s128 = sphi 0, %s114
      %s134 = sphi 0, %s136
      %s137 = sphi 0, %s134
      %s138 = sphi 0, %s137
      %s154 = sphi 0, %s138
    $region4: #{tpu_custom_call.1} parent=1 // loop_header_branch
      %17 = sbr.rel (%p15) target = $region8
    $region5: #{tpu_custom_call.1} parent=1 // loop_body
      %s19 = ssub.s32 %s14, 1
      %s20 = ssub.s32 %s14, 2
      %s21 = sadd.s32 %s14, 1
      %s22 = ssub.s32 %s14, %s21
      %p23 = scmp.eq.s32.totalorder %s22, 0
      %s25 = sadd.s32 %s24, 1
      %s26 = scalar_select %p23, %s24, %s25
      %p29 = pneg %p23
      %p30 = scmp.eq.s32.totalorder %s14, 1
      %p31 = por %p29, %p30
      %p32 = scmp.ne.s32.totalorder %s24, %s27
      %p33 = scmp.eq.s32.totalorder %s14, 0
      %p34 = por %p32, %p33
      %p35 = scmp.ne.s32.totalorder %s24, %s27
      %p36 = scmp.eq.s32.totalorder %s19, 1
      %p37 = por %p35, %p36
      %p38 = scmp.ne.s32.totalorder %s27, %s28
      %p39 = scmp.eq.s32.totalorder %s19, 0
      %p40 = por %p38, %p39
      %p41 = scmp.ne.s32.totalorder %s27, %s28
      %p42 = scmp.eq.s32.totalorder %s20, 1
      %p43 = por %p41, %p42
      %p45 = scmp.ne.s32.totalorder %s28, %s44
      %p46 = scmp.eq.s32.totalorder %s20, 0
      %p47 = por %p45, %p46
      %s49 = sadd.s32 %s48, 1
      %p52 = scmp.eq.s32.totalorder %s14, 1
      %p53 = scmp.ne.s32.totalorder %s48, %s50
      %p54 = scmp.eq.s32.totalorder %s14, 0
      %p55 = por %p53, %p54
      %p56 = scmp.ne.s32.totalorder %s48, %s50
      %p57 = scmp.eq.s32.totalorder %s19, 1
      %p58 = por %p56, %p57
      %p59 = scmp.ne.s32.totalorder %s50, %s51
      %p60 = scmp.eq.s32.totalorder %s19, 0
      %p61 = por %p59, %p60
      %p62 = scmp.ne.s32.totalorder %s50, %s51
      %p63 = scmp.eq.s32.totalorder %s20, 1
      %p64 = por %p62, %p63
      %p66 = scmp.ne.s32.totalorder %s51, %s65
      %p67 = scmp.eq.s32.totalorder %s20, 0
      %p68 = por %p66, %p67
      %s70 = sadd.s32 %s69, 1
      %p73 = scmp.eq.s32.totalorder %s14, 1
      %p74 = scmp.ne.s32.totalorder %s69, %s71
      %p75 = scmp.eq.s32.totalorder %s14, 0
      %p76 = por %p74, %p75
      %p77 = scmp.ne.s32.totalorder %s69, %s71
      %p78 = scmp.eq.s32.totalorder %s19, 1
      %p79 = por %p77, %p78
      %p80 = scmp.ne.s32.totalorder %s71, %s72
      %p81 = scmp.eq.s32.totalorder %s19, 0
      %p82 = por %p80, %p81
      %p83 = scmp.ne.s32.totalorder %s71, %s72
      %p84 = scmp.eq.s32.totalorder %s20, 1
      %p85 = por %p83, %p84
      %p87 = scmp.ne.s32.totalorder %s72, %s86
      %p88 = scmp.eq.s32.totalorder %s20, 0
      %p89 = por %p87, %p88
      %s91 = sadd.s32 %s90, 1
      %p94 = scmp.eq.s32.totalorder %s14, 1
      %p95 = scmp.ne.s32.totalorder %s90, %s92
      %p96 = scmp.eq.s32.totalorder %s14, 0
      %p97 = por %p95, %p96
      %p98 = scmp.ne.s32.totalorder %s90, %s92
      %p99 = scmp.eq.s32.totalorder %s19, 1
      %p100 = por %p98, %p99
      %p101 = scmp.ne.s32.totalorder %s92, %s93
      %p102 = scmp.eq.s32.totalorder %s19, 0
      %p103 = por %p101, %p102
      %p104 = scmp.ne.s32.totalorder %s92, %s93
      %p105 = scmp.eq.s32.totalorder %s20, 1
      %p106 = por %p104, %p105
      %p108 = scmp.ne.s32.totalorder %s93, %s107
      %p109 = scmp.eq.s32.totalorder %s20, 0
      %p110 = por %p108, %p109
      %s112 = sadd.s32 %s111, 1
      %p115 = scmp.eq.s32.totalorder %s14, 1
      %p116 = scmp.ne.s32.totalorder %s111, %s113
      %p117 = scmp.eq.s32.totalorder %s14, 0
      %p118 = por %p116, %p117
      %p119 = scmp.ne.s32.totalorder %s111, %s113
      %p120 = scmp.eq.s32.totalorder %s19, 1
      %p121 = por %p119, %p120
      %p122 = scmp.ne.s32.totalorder %s113, %s114
      %p123 = scmp.eq.s32.totalorder %s19, 0
      %p124 = por %p122, %p123
      %p125 = scmp.ne.s32.totalorder %s113, %s114
      %p126 = scmp.eq.s32.totalorder %s20, 1
      %p127 = por %p125, %p126
      %p129 = scmp.ne.s32.totalorder %s114, %s128
      %p130 = scmp.eq.s32.totalorder %s20, 0
      %p131 = por %p129, %p130
      %s132 = ssub.s32 %s14, %s21
      %p133 = scmp.eq.s32.totalorder %s132, 0
      %s135 = sadd.s32 %s134, 1
      %s136 = scalar_select %p133, %s134, %s135
      %p139 = pneg %p133
      %p140 = scmp.eq.s32.totalorder %s14, 1
      %p141 = por %p139, %p140
      %p142 = scmp.ne.s32.totalorder %s134, %s137
      %p143 = scmp.eq.s32.totalorder %s14, 0
      %p144 = por %p142, %p143
      %p145 = scmp.ne.s32.totalorder %s134, %s137
      %p146 = scmp.eq.s32.totalorder %s19, 1
      %p147 = por %p145, %p146
      %p148 = scmp.ne.s32.totalorder %s137, %s138
      %p149 = scmp.eq.s32.totalorder %s19, 0
      %p150 = por %p148, %p149
      %p151 = scmp.ne.s32.totalorder %s137, %s138
      %p152 = scmp.eq.s32.totalorder %s20, 1
      %p153 = por %p151, %p152
      %p155 = scmp.ne.s32.totalorder %s138, %s154
      %p156 = scmp.eq.s32.totalorder %s20, 0
      %p157 = por %p155, %p156
      %p158 = scmp.le.s32.totalorder 1, %s14
      %p159 = scmp.lt.s32.totalorder %s14, 3
      %p160 = pnand %p158, %p159
      %p161 = pneg %p160
      // Predicated region
      $region9: #{tpu_custom_call.1} parent=5 // pred_check
        _
      $region10: #{tpu_custom_call.1} parent=5 // pred_check_branch
        %163 = sbr.rel (%p160) target = $region12
      $region11: #{tpu_custom_call.1} parent=5 // pred_region
        %s164 = ssub.s32 %s14, 1
        // Predicated region
        $region13: #{tpu_custom_call.1} parent=11 // pred_check
          %p165 = pneg %p61
        $region14: #{tpu_custom_call.1} parent=11 // pred_check_branch
          %167 = sbr.rel (%p165) target = $region16
        $region15: #{tpu_custom_call.1} parent=11 // pred_region
          _
        $region16: #{tpu_custom_call.1} parent=11 // pred_fallthru
          _
        // Predicated region
        $region17: #{tpu_custom_call.1} parent=11 // pred_check
          %p168 = pneg %p82
        $region18: #{tpu_custom_call.1} parent=11 // pred_check_branch
          %170 = sbr.rel (%p168) target = $region20
        $region19: #{tpu_custom_call.1} parent=11 // pred_region
          _
        $region20: #{tpu_custom_call.1} parent=11 // pred_fallthru
          _
        // Predicated region
        $region21: #{tpu_custom_call.1} parent=11 // pred_check
          %p171 = pneg %p103
        $region22: #{tpu_custom_call.1} parent=11 // pred_check_branch
          %173 = sbr.rel (%p171) target = $region24
        $region23: #{tpu_custom_call.1} parent=11 // pred_region
          _
        $region24: #{tpu_custom_call.1} parent=11 // pred_fallthru
          _
        // Predicated region
        $region25: #{tpu_custom_call.1} parent=11 // pred_check
          %p174 = pneg %p124
        $region26: #{tpu_custom_call.1} parent=11 // pred_check_branch
          %176 = sbr.rel (%p174) target = $region28
        $region27: #{tpu_custom_call.1} parent=11 // pred_region
          _
        $region28: #{tpu_custom_call.1} parent=11 // pred_fallthru
          _
      $region12: #{tpu_custom_call.1} parent=5 // pred_fallthru
        _
      %p177 = scmp.lt.s32.totalorder %s14, 2
      // Predicated region
      $region29: #{tpu_custom_call.1} parent=5 // pred_check
        %p178 = pneg %p177
      $region30: #{tpu_custom_call.1} parent=5 // pred_check_branch
        %180 = sbr.rel (%p178) target = $region32
      $region31: #{tpu_custom_call.1} parent=5 // pred_region
        // Predicated region
        $region33: #{tpu_custom_call.1} parent=31 // pred_check
          %p181 = pneg %p34
        $region34: #{tpu_custom_call.1} parent=31 // pred_check_branch
          %183 = sbr.rel (%p181) target = $region36
        $region35: #{tpu_custom_call.1} parent=31 // pred_region
          %s184 = smul.u32 4, %s14
          %s185 = ssub.s32 7, %s184
          %p186 = scmp.lt.s32.totalorder %s185, 4
          %s187 = scalar_select %p186, %s185, 4
          %s188 = smul.u32 64, %s187
          %p189 = scmp.lt.s32.totalorder %s184, 6
          %s190 = scalar_select %p189, %s184, 6
          %s191 = smul.addr %s190, 4
          %s192 = scalar_lea.vmem %s0, %s191
          %s193 = smul.u32 4, %s14
          %s194 = ssub.s32 7, %s193
          %p195 = scmp.lt.s32.totalorder %s194, 4
          %s196 = scalar_select %p195, %s194, 4
          %s197 = smul.u32 64, %s196
        $region36: #{tpu_custom_call.1} parent=31 // pred_fallthru
          _
      $region32: #{tpu_custom_call.1} parent=5 // pred_fallthru
        _
      %p198 = scmp.le.s32.totalorder 1, %s14
      %p199 = scmp.lt.s32.totalorder %s14, 3
      %p200 = pnand %p198, %p199
      %p201 = pneg %p200
      // Predicated region
      $region37: #{tpu_custom_call.1} parent=5 // pred_check
        _
      $region38: #{tpu_custom_call.1} parent=5 // pred_check_branch
        %203 = sbr.rel (%p200) target = $region40
      $region39: #{tpu_custom_call.1} parent=5 // pred_region
        %s204 = ssub.s32 %s14, 1
        %s205 = smul.u32 4, %s19
        %s206 = ssub.s32 7, %s205
        %p207 = scmp.lt.s32.totalorder %s206, 4
        %s208 = scalar_select %p207, %s206, 4
        %s209 = smul.u32 64, %s208
        %p210 = scmp.lt.s32.totalorder %s205, 6
        %s211 = scalar_select %p210, %s205, 6
        %s212 = smul.addr %s211, 4
        %s213 = scalar_lea.vmem %s0, %s212
        %p214 = pneg %p40
        %p215 = pneg %p37
        %p216 = pneg %p61
        %p217 = pneg %p58
        %p218 = pneg %p82
        %p219 = pneg %p79
        %p220 = pneg %p103
        %p221 = pneg %p100
        %p222 = pneg %p124
        %p223 = pneg %p121
        %p224 = pneg %p150
        %p225 = pneg %p147
        %s226 = sand.u32 %s137, 1
        %s227 = scalar_lea.sflag [#allocation3], %s226
        %s228 = sand.u32 %s137, 1
        %s229 = smul.addr %s228, 16
        %s230 = scalar_lea.vmem [#allocation2], %s229
        %s231 = smul.u32 4, %s19
        %s232 = ssub.s32 7, %s231
        %p233 = scmp.lt.s32.totalorder %s232, 4
        %s234 = scalar_select %p233, %s232, 4
        %s235 = smul.u32 64, %s234
        %p236 = scmp.lt.s32.totalorder %s231, 6
        %s237 = scalar_select %p236, %s231, 6
        %s238 = smul.addr %s237, 4
        %s239 = scalar_lea.vmem %s0, %s238
        %s240 = smul.u32 4, %s19
        %s241 = ssub.s32 7, %s240
        %p242 = scmp.lt.s32.totalorder %s241, 4
        %s243 = scalar_select %p242, %s241, 4
        %s244 = smul.u32 64, %s243
        %s245 = smul.u32 4, %s19
        %s246 = ssub.s32 7, %s245
        %p247 = scmp.lt.s32.totalorder %s246, 4
        %s248 = scalar_select %p247, %s246, 4
        %s249 = smul.u32 64, %s248
        %v251 = vld [vmem:[%s239] sm:$0xf]
        %v252 = vld [vmem:[%s239 + $0x4] sm:$0xf]
        %v253 = vld [vmem:[%s239 + $0x8] sm:$0xf]
        %v254 = vld [vmem:[%s239 + $0xc] sm:$0xf]
        %v255 = vld [vmem:[%s1] sm:$0xf]
        %v256 = vld [vmem:[%s1 + $0x4] sm:$0xf]
        %v257 = vld [vmem:[%s1 + $0x8] sm:$0xf]
        %v258 = vld [vmem:[%s1 + $0xc] sm:$0xf]
        %v259 = vld [vmem:[%s1 + $0x10] sm:$0xf]
        %v260 = vld [vmem:[%s1 + $0x14] sm:$0xf]
        %v261 = vld [vmem:[%s2] sm:$0x1]
        %v263 = vlaneseq
        %v264 = vshrl.u32 %v263, 7
        %v265 = vsub.s32 0, %v264
        %v266 = vrot.slane %v261, %v265
        %v272 = vunpack.c.l.b16 %v251
        %v273 = vunpack.c.l.b16 %v252
        %v274 = vunpack.c.l.b16 %v253
        %v275 = vunpack.c.l.b16 %v254
        %v276 = vpack.c.b16 %v273, %v272
        %v277 = vpack.c.b16 %v275, %v274
        %v284 = vunpack.c.l.b16 %v255
        %v285 = vunpack.c.l.b16 %v256
        %v286 = vunpack.c.l.b16 %v257
        %v287 = vunpack.c.l.b16 %v258
        %v288 = vunpack.c.l.b16 %v259
        %v289 = vunpack.c.l.b16 %v260
        %v290 = vpack.c.b16 %v285, %v284
        %v291 = vpack.c.b16 %v287, %v286
        %v292 = vpack.c.b16 %v289, %v288
        %vm296 = vcmask 392192
        %v298 = vsel %vm296, %v276, 0
        %v301 = vsel %vm296, %v277, 0
        %303 = vmatprep.subr.bf16.mxu0 0
        %304 = vmatpush1.bf16.msra.mxu0 0
        %305 = vmatprep.subr.bf16.mxu0 0
        %306 = vmatpush1.bf16.msra.mxu0 0
        %307 = vmatprep.subr.bf16.mxu0 0
        %308 = vmatpush1.bf16.msra.mxu0 0
        %309 = vmatprep.subr.bf16.mxu0 0
        %310 = vmatpush1.bf16.msra.mxu0 0
        %311 = vmatprep.subr.bf16.mxu0 0
        %312 = vmatpush1.bf16.msra.mxu0 0
        %313 = vmatprep.subr.bf16.mxu0 0
        %314 = vmatpush1.bf16.msra.mxu0 %v292
        %315 = vmatprep.subr.bf16.mxu0 0
        %316 = vmatpush1.bf16.msra.mxu0 %v291
        %317 = vmatprep.subr.bf16.mxu0 0
        %318 = vmatpush1.bf16.msra.mxu0 %v290
        %319 = vmatprep.subr.bf16.mxu0 0
        %320 = vmatpush2.bf16.msra.mxu0 0
        %321 = vmatprep.subr.bf16.mxu0 0
        %322 = vmatpush2.bf16.msra.mxu0 0
        %323 = vmatprep.subr.bf16.mxu0 0
        %324 = vmatpush2.bf16.msra.mxu0 0
        %325 = vmatprep.subr.bf16.mxu0 0
        %326 = vmatpush2.bf16.msra.mxu0 0
        %327 = vmatprep.subr.bf16.mxu0 0
        %328 = vmatpush2.bf16.msra.mxu0 0
        %329 = vmatprep.subr.bf16.mxu0 0
        %330 = vmatpush2.bf16.msra.mxu0 0
        %331 = vmatprep.subr.bf16.mxu0 0
        %332 = vmatpush2.bf16.msra.mxu0 0
        %333 = vmatprep.subr.bf16.mxu0 0
        %334 = vmatpush2.bf16.msra.mxu0 0
        %335 = vmatprep.mubr.bf16.mxu0 0
        %336 = vmatmul.mubr.bf16.gmra.mxu0 %v298
        %v337 = vpop.f32.mrf.mxu0
        %v338 = vadd.f32 %v266, %v337
        %v339 = vpop.f32.mrf.mxu0
        %v340 = vpop.f32.mrf.mxu0
        %v341 = vadd.f32 %v266, %v340
        %v342 = vpop.f32.mrf.mxu0
        %343 = vmatprep.mubr.bf16.mxu0 0
        %344 = vmatmul.mubr.bf16.gmra.mxu0 %v301
        %v345 = vpop.f32.mrf.mxu0
        %v346 = vadd.f32 %v266, %v345
        %v347 = vpop.f32.mrf.mxu0
        %v348 = vpop.f32.mrf.mxu0
        %v349 = vadd.f32 %v266, %v348
        %v350 = vpop.f32.mrf.mxu0
        %351 = vdwg.mxu0
        %352 = vadd.xlane.f32.xlu0 %v338
        %v353 = vpop.xlane.xlu0 %352
        %354 = vadd.xlane.f32.xlu0 %v341
        %v355 = vpop.xlane.xlu0 %354
        %356 = vadd.xlane.f32.xlu0 %v346
        %v357 = vpop.xlane.xlu0 %356
        %358 = vadd.xlane.f32.xlu0 %v349
        %v359 = vpop.xlane.xlu0 %358
        %v360 = vrcp.pop 128.0
        %v361 = vmul.f32 %v353, %v360
        %v362 = vmul.f32 %v355, %v360
        %v363 = vmul.f32 %v357, %v360
        %v364 = vmul.f32 %v359, %v360
        %v365 = vsub.f32 %v338, %v361
        %v366 = vsub.f32 %v341, %v362
        %v367 = vsub.f32 %v346, %v363
        %v368 = vsub.f32 %v349, %v364
        %v369 = vmul.f32 %v365, %v365
        %v370 = vmul.f32 %v366, %v366
        %v371 = vmul.f32 %v367, %v367
        %v372 = vmul.f32 %v368, %v368
        %373 = vadd.xlane.f32.xlu0 %v369
        %v374 = vpop.xlane.xlu0 %373
        %375 = vadd.xlane.f32.xlu0 %v370
        %v376 = vpop.xlane.xlu0 %375
        %377 = vadd.xlane.f32.xlu0 %v371
        %v378 = vpop.xlane.xlu0 %377
        %379 = vadd.xlane.f32.xlu0 %v372
        %v380 = vpop.xlane.xlu0 %379
        %v381 = vmul.f32 %v374, %v360
        %v382 = vmul.f32 %v376, %v360
        %v383 = vmul.f32 %v378, %v360
        %v384 = vmul.f32 %v380, %v360
        %v385 = vadd.f32 %v381, 1e-05
        %v386 = vadd.f32 %v382, 1e-05
        %v387 = vadd.f32 %v383, 1e-05
        %v388 = vadd.f32 %v384, 1e-05
        %v389 = vrsqrt.pop %v385
        %v390 = vrsqrt.pop %v386
        %v391 = vrsqrt.pop %v387
        %v392 = vrsqrt.pop %v388
        %v393 = vmul.f32 %v365, %v389
        %v394 = vmul.f32 %v366, %v390
        %v395 = vmul.f32 %v367, %v391
        %v396 = vmul.f32 %v368, %v392
        %v397 = vld [vmem:[%s3] sm:$0x1]
        %v399 = vlaneseq
        %v400 = vshrl.u32 %v399, 7
        %v401 = vsub.s32 0, %v400
        %v402 = vrot.slane %v397, %v401
        %v404 = vmul.f32 %v393, %v402
        %v405 = vmul.f32 %v394, %v402
        %v406 = vmul.f32 %v395, %v402
        %v407 = vmul.f32 %v396, %v402
        %v408 = vld [vmem:[%s4] sm:$0x1]
        %v410 = vlaneseq
        %v411 = vshrl.u32 %v410, 7
        %v412 = vsub.s32 0, %v411
        %v413 = vrot.slane %v408, %v412
        %v415 = vadd.f32 %v404, %v413
        %v416 = vadd.f32 %v405, %v413
        %v417 = vadd.f32 %v406, %v413
        %v418 = vadd.f32 %v407, %v413
        %v419 = vpack.c.bf16 %v416, %v415
        %v420 = vpack.c.bf16 %v418, %v417
        %v423 = vunpack.c.l.b16 %v419
        %v424 = vunpack.c.h.b16 %v419
        %v425 = vunpack.c.l.b16 %v420
        %v426 = vunpack.c.h.b16 %v420
        %v427 = vpack.c.b16 %v423, %v423
        %v428 = vpack.c.b16 %v424, %v424
        %v429 = vpack.c.b16 %v425, %v425
        %v430 = vpack.c.b16 %v426, %v426
        %435 = vst [vmem:[%s230] sm:$0xf] %v427
        %436 = vst [vmem:[%s230 + $0x4] sm:$0xf] %v428
        %437 = vst [vmem:[%s230 + $0x8] sm:$0xf] %v429
        %438 = vst [vmem:[%s230 + $0xc] sm:$0xf] %v430
        %s439 = sand.u32 %s137, 1
        %s440 = scalar_lea.sflag [#allocation3], %s439
        %s441 = sand.u32 %s137, 1
        %s442 = smul.addr %s441, 16
        %s443 = scalar_lea.vmem [#allocation2], %s442
        // Predicated region
        $region41: #{tpu_custom_call.1} parent=39 // pred_check
          %p444 = pneg %p147
        $region42: #{tpu_custom_call.1} parent=39 // pred_check_branch
          %446 = sbr.rel (%p444) target = $region44
        $region43: #{tpu_custom_call.1} parent=39 // pred_region
          %s447 = smul.u32 4, %s19
          %s448 = ssub.s32 7, %s447
          %p449 = scmp.lt.s32.totalorder %s448, 4
          %s450 = scalar_select %p449, %s448, 4
          %s451 = smul.u32 64, %s450
          %s453 = ssub.s32 256, %s451
          %454 = vsyncadd %s440, %s453
          %p455 = scmp.ne.s32.totalorder 0, %s451
          %s456 = smul.addr %s447, 64
          %s457 = scalar_lea.hbm %s5, %s456
          %s458 = smul.u32 4, %s450
          %s459 = sshll.u32 %s443, 4
          %s460 = int_to_ptr.vmem [resolvable:$true] %s459
          %s461 = sshll.u32 %s458, 4
          %465 = dma.vmem_to_hbm [thread:$0]  (%p455), %s460, %s461, %s457, %s440, 64, 64, 4
        $region44: #{tpu_custom_call.1} parent=39 // pred_fallthru
          _
      $region40: #{tpu_custom_call.1} parent=5 // pred_fallthru
        _
      %p466 = scmp.le.s32.totalorder 2, %s14
      // Predicated region
      $region45: #{tpu_custom_call.1} parent=5 // pred_check
        %p467 = pneg %p466
      $region46: #{tpu_custom_call.1} parent=5 // pred_check_branch
        %469 = sbr.rel (%p467) target = $region48
      $region47: #{tpu_custom_call.1} parent=5 // pred_region
        %s470 = ssub.s32 %s14, 2
        // Predicated region
        $region49: #{tpu_custom_call.1} parent=47 // pred_check
          %p471 = pneg %p153
        $region50: #{tpu_custom_call.1} parent=47 // pred_check_branch
          %473 = sbr.rel (%p471) target = $region52
        $region51: #{tpu_custom_call.1} parent=47 // pred_region
          %s474 = sand.u32 %s138, 1
          %s475 = scalar_lea.sflag [#allocation3], %s474
          %s476 = sand.u32 %s138, 1
          %s477 = smul.addr %s476, 16
          %s478 = scalar_lea.vmem [#allocation2], %s477
          %479 = dma.done %s475, 256
        $region52: #{tpu_custom_call.1} parent=47 // pred_fallthru
          _
      $region48: #{tpu_custom_call.1} parent=5 // pred_fallthru
        _
    $region6: #{tpu_custom_call.1} parent=1 // loop_footer
      %s18 = sadd.s32 1, %s14
    $region7: #{tpu_custom_call.1} parent=1 // loop_footer_branch
      %13 = sbr.rel target = $region3
    $region8: #{tpu_custom_call.1} parent=1 // loop_exit
      _
    %480 = vsyncpa [#allocation3], 1
    %s481 = scalar_lea.sflag [#allocation3], 1
    %482 = vsyncpa %s481, 1

</llo_original>
